<compile_context>
chip_gen: v6e
topology: v6e:2x2x1
jax: 0.10.0
libtpu: 0.0.40
codegen_flags: <defaults>
</compile_context>

<pallas_src>
import math
import functools

import jax
import jax.numpy as jnp
from jax import lax
from jax.experimental import pallas as pl
from jax.experimental.pallas import tpu as pltpu

# ---------------- model / problem sizes (small, consistent with forward) ----
B = 2          # batch
H = 4          # num_heads
E = 32         # embed_dimension
D = E // H     # head_dim
SQ = 8         # query sequence length
SK = 16        # key/value sequence length

MASK_NEG = -1e9


def cross_attention_kernel(q_ref, k_ref, v_ref, mask_ref, wqkv_ref, wp_ref,
                           o_ref, mask_bd_ref, y_ref,
                           *, num_heads, head_dim, scale, mask_neg):
    """Single invocation processes the whole batch.

    q_ref     : (B, SQ, E) f32   (native input)
    k_ref/v_ref : (B, SK, E) f32 (native inputs)
    mask_ref  : (B, H, SQ, SK) f32 additive mask (native input)
    wqkv_ref  : (E, 3E) bf16     (Wq | Wk | Wv, prepared at init)
    wp_ref    : (E, E)  bf16
    o_ref     : (B, SQ, E) in the caller's dtype
    mask_bd_ref : VMEM scratch (H, B*SQ, B*SK) f32  -- block-diag mask
    y_ref       : VMEM scratch (B*SQ, E) f32        -- per-head output slabs
    """
    nb, sq, e = q_ref.shape
    sk = k_ref.shape[1]
    mq = nb * sq                     # batch-folded query rows
    mk = nb * sk                     # batch-folded key rows

    # ---- fold batch into the MXU M dimension; bf16 casts done in-kernel ---
    q2 = q_ref[...].reshape(mq, e)
    k2 = k_ref[...].reshape(mk, e)
    v2 = v_ref[...].reshape(mk, e)
    x = jnp.concatenate([q2, k2, v2], axis=0).astype(jnp.bfloat16)  # (mq+2mk, e)

    # ---- fused QKV projection: ONE MXU matmul, N = 3E ---------------------
    # (2/3 of the result are unused cross products; at this size the waste is
    # negligible and it minimizes MXU pushes / operand count.)
    proj = jnp.dot(x, wqkv_ref[...], preferred_element_type=jnp.float32)
    qp = proj[:mq, :e] * scale                    # scale applied once, pre-loop
    kp = proj[mq:mq + mk, e:2 * e]
    vp = proj[mq + mk:, 2 * e:]

    # Hoisted bf16 casts (per-head slices taken from the already-cast arrays).
    qh_all = qp.astype(jnp.bfloat16)
    kh_all = kp.astype(jnp.bfloat16)
    vh_all = vp.astype(jnp.bfloat16)

    # ---- block-diagonal (over batch) additive mask, assembled in VMEM -----
    # Off-batch blocks stay at mask_neg so the batch-folded attention matches
    # the per-batch reference exactly (all of this stays in f32).
    mask_bd_ref[...] = jnp.full((num_heads, mq, mk), mask_neg, jnp.float32)
    for h in range(num_heads):
        for bi in range(nb):
            mask_bd_ref[h, bi * sq:(bi + 1) * sq, bi * sk:(bi + 1) * sk] = (
                mask_ref[bi, h].astype(jnp.float32))

    # ---- per-head attention; heads written into column slabs of y_ref -----
    for h in range(num_heads):
        lo = h * head_dim
        hi = lo + head_dim
        qh = qh_all[:, lo:hi]                     # (mq, D) bf16
        kh = kh_all[:, lo:hi]                     # (mk, D) bf16
        vh = vh_all[:, lo:hi]                     # (mk, D) bf16

        # q @ k^T by contracting the last dims directly (no transpose op).
        s = lax.dot_general(qh, kh, (((1,), (1,)), ((), ())),
                            preferred_element_type=jnp.float32)     # (mq, mk)
        s = s + mask_bd_ref[h]

        m = jnp.max(s, axis=-1, keepdims=True)
        p = jnp.exp(s - m)                        # unnormalized, f32
        l = jnp.sum(p, axis=-1, keepdims=True)

        yh = jnp.dot(p.astype(jnp.bfloat16), vh,
                     preferred_element_type=jnp.float32)             # (mq, D)
        # Normalize AFTER P@V: (mq, D) multiply instead of (mq, mk).
        y_ref[:, lo:hi] = yh * pl.reciprocal(l, approx=True)

    # ---- single output projection with K = E (was 4 tiny K=8 matmuls) -----
    out = jnp.dot(y_ref[...].astype(jnp.bfloat16), wp_ref[...],
                  preferred_element_type=jnp.float32)                # (mq, e)
    o_ref[...] = out.reshape(o_ref.shape).astype(o_ref.dtype)


def prepare_params(wq, wk, wv, wp):
    """One-time (init-style) weight prep: fuse Wq|Wk|Wv and cast to bf16."""
    wqkv = jnp.concatenate([wq, wk, wv], axis=1).astype(jnp.bfloat16)  # (E, 3E)
    return wqkv, wp.astype(jnp.bfloat16)


@jax.jit
def cross_attention(q, k, v, flash_mask, wqkv, wp):
    """q: (B,SQ,E) k,v: (B,SK,E) flash_mask: (B,H,SQ,SK) additive float.

    wqkv/wp come from prepare_params (done once, outside the per-call path).
    """
    b, sq, e = q.shape
    sk = k.shape[1]
    h = flash_mask.shape[1]
    d = e // h

    flops = (2 * (b * sq + 2 * b * sk) * e * (3 * e)   # fused QKV projection
             + 2 * h * (b * sq) * (b * sk) * d         # scores
             + 2 * h * (b * sq) * (b * sk) * d         # P @ V
             + 2 * (b * sq) * e * e)                   # output projection
    bytes_accessed = ((q.size + k.size + v.size + flash_mask.size) * 4
                      + (wqkv.size + wp.size) * 2
                      + b * sq * e * 4)
    cost = pl.CostEstimate(flops=flops,
                           transcendentals=h * (b * sq) * (b * sk),
                           bytes_accessed=bytes_accessed)

    kernel = functools.partial(cross_attention_kernel, num_heads=h, head_dim=d,
                               scale=1.0 / math.sqrt(d), mask_neg=MASK_NEG)

    vmem = pl.BlockSpec(memory_space=pltpu.MemorySpace.VMEM)
    return pl.pallas_call(
        kernel,
        out_shape=jax.ShapeDtypeStruct((b, sq, e), q.dtype),
        in_specs=[vmem] * 6,
        out_specs=vmem,
        scratch_shapes=[pltpu.VMEM((h, b * sq, b * sk), jnp.float32),
                        pltpu.VMEM((b * sq, e), jnp.float32)],
        cost_estimate=cost,
    )(q, k, v, flash_mask, wqkv, wp)


def reference(q, k, v, flash_mask, wq, wk, wv, wp):
    """Pure-JAX f32 reference mirroring the PyTorch forward (eval mode)."""
    qp = q @ wq
    kp = k @ wk
    vp = v @ wv
    b, sq, e = qp.shape
    sk = kp.shape[1]
    qh = qp.reshape(b, sq, H, D).transpose(0, 2, 1, 3)   # (B,H,SQ,D)
    kh = kp.reshape(b, sk, H, D).transpose(0, 2, 1, 3)   # (B,H,SK,D)
    vh = vp.reshape(b, sk, H, D).transpose(0, 2, 1, 3)   # (B,H,SK,D)
    s = jnp.einsum("bhqd,bhkd->bhqk", qh, kh) / math.sqrt(D) + flash_mask
    p = jax.nn.softmax(s, axis=-1)
    y = jnp.einsum("bhqk,bhkd->bhqd", p, vh)
    y = y.transpose(0, 2, 1, 3).reshape(b, sq, e)
    return y @ wp


if __name__ == "__main__":
    key = jax.random.PRNGKey(0)
    kq, kk, kv, km, k1, k2, k3, k4 = jax.random.split(key, 8)

    q = jax.random.normal(kq, (B, SQ, E), dtype=jnp.float32)
    k = jax.random.normal(kk, (B, SK, E), dtype=jnp.float32)
    v = jax.random.normal(kv, (B, SK, E), dtype=jnp.float32)
    # Additive float mask (0 = attend, large negative = masked).
    flash_mask = jnp.where(
        jax.random.uniform(km, (B, H, SQ, SK)) > 0.2, 0.0, MASK_NEG
    ).astype(jnp.float32)

    # Deterministic parameter init (Linear weights stored as [in, out]).
    scale = 1.0 / math.sqrt(E)
    wq = jax.random.normal(k1, (E, E), dtype=jnp.float32) * scale
    wk = jax.random.normal(k2, (E, E), dtype=jnp.float32) * scale
    wv = jax.random.normal(k3, (E, E), dtype=jnp.float32) * scale
    wp = jax.random.normal(k4, (E, E), dtype=jnp.float32) * scale
    # TODO(synk): dropout path (dropout_p > 0, training=True) not implemented;
    # module is exercised in eval mode where dropout is a no-op.

    wqkv_b, wp_b = prepare_params(wq, wk, wv, wp)   # init-time weight prep

    out = cross_attention(q, k, v, flash_mask, wqkv_b, wp_b)
    out = jax.block_until_ready(out)

    ref = reference(q, k, v, flash_mask, wq, wk, wv, wp)
    # Tolerance relaxed vs. a pure-f32 version because MXU operands are bf16
    # (f32 accumulation) and the softmax denominator uses the EUP approximate
    # reciprocal.
    err = jnp.max(jnp.abs(out - ref))
    assert jnp.allclose(out, ref, atol=3e-2, rtol=3e-2), f"max err {err}"

    print("KERNEL_OK")
</pallas_src>

<mosaic_0001>
module attributes {stable_mosaic.version = 11 : i64} {
  func.func @cross_attention_kernel(%arg0: memref<2x8x32xf32, #tpu.memory_space<vmem>>, %arg1: memref<2x16x32xf32, #tpu.memory_space<vmem>>, %arg2: memref<2x16x32xf32, #tpu.memory_space<vmem>>, %arg3: memref<2x4x8x16xf32, #tpu.memory_space<vmem>>, %arg4: memref<32x96xbf16, #tpu.memory_space<vmem>>, %arg5: memref<32x32xbf16, #tpu.memory_space<vmem>>, %arg6: memref<2x8x32xf32, #tpu.memory_space<vmem>>, %arg7: memref<4x16x32xf32, #tpu.memory_space<vmem>>, %arg8: memref<16x32xf32, #tpu.memory_space<vmem>>) attributes {dimension_semantics = [], scalar_prefetch = 0 : i64, scratch_operands = 2 : i64, tpu.core_type = #tpu.core_type<tc>} {
    %c0 = arith.constant 0 : index
    %c0_0 = arith.constant 0 : index
    %c0_1 = arith.constant 0 : index
    %0 = vector.load %arg0[%c0, %c0_0, %c0_1] : memref<2x8x32xf32, #tpu.memory_space<vmem>>, vector<2x8x32xf32>
    %1 = vector.shape_cast %0 : vector<2x8x32xf32> to vector<16x32xf32>
    %c0_2 = arith.constant 0 : index
    %c0_3 = arith.constant 0 : index
    %c0_4 = arith.constant 0 : index
    %2 = vector.load %arg1[%c0_2, %c0_3, %c0_4] : memref<2x16x32xf32, #tpu.memory_space<vmem>>, vector<2x16x32xf32>
    %3 = vector.shape_cast %2 : vector<2x16x32xf32> to vector<32x32xf32>
    %c0_5 = arith.constant 0 : index
    %c0_6 = arith.constant 0 : index
    %c0_7 = arith.constant 0 : index
    %4 = vector.load %arg2[%c0_5, %c0_6, %c0_7] : memref<2x16x32xf32, #tpu.memory_space<vmem>>, vector<2x16x32xf32>
    %5 = vector.shape_cast %4 : vector<2x16x32xf32> to vector<32x32xf32>
    %6 = tpu.concatenate %1, %3, %5 in 0 : vector<16x32xf32>, vector<32x32xf32>, vector<32x32xf32> -> vector<80x32xf32>
    %7 = arith.truncf %6 : vector<80x32xf32> to vector<80x32xbf16>
    %c0_8 = arith.constant 0 : index
    %c0_9 = arith.constant 0 : index
    %8 = vector.load %arg4[%c0_8, %c0_9] : memref<32x96xbf16, #tpu.memory_space<vmem>>, vector<32x96xbf16>
    %cst = arith.constant dense<0.000000e+00> : vector<80x96xf32>
    %9 = tpu.matmul %7, %8, %cst {dimension_numbers = #tpu.dot_dimension_numbers<[1], [0], [0], [1], [0, 0, 1, 1], [], []>} : vector<80x32xbf16>, vector<32x96xbf16>, vector<80x96xf32> -> vector<80x96xf32>
    %10 = vector.extract_strided_slice %9 {offsets = [0, 0], sizes = [16, 32], strides = [1, 1]} : vector<80x96xf32> to vector<16x32xf32>
    %cst_10 = arith.constant 0.353553385 : f32
    %11 = vector.broadcast %cst_10 : f32 to vector<16x32xf32>
    %12 = arith.mulf %10, %11 : vector<16x32xf32>
    %13 = vector.extract_strided_slice %9 {offsets = [16, 32], sizes = [32, 32], strides = [1, 1]} : vector<80x96xf32> to vector<32x32xf32>
    %14 = vector.extract_strided_slice %9 {offsets = [48, 64], sizes = [32, 32], strides = [1, 1]} : vector<80x96xf32> to vector<32x32xf32>
    %15 = arith.truncf %12 : vector<16x32xf32> to vector<16x32xbf16>
    %16 = arith.truncf %13 : vector<32x32xf32> to vector<32x32xbf16>
    %17 = arith.truncf %14 : vector<32x32xf32> to vector<32x32xbf16>
    %cst_11 = arith.constant -1.000000e+09 : f32
    %18 = vector.broadcast %cst_11 : f32 to vector<4x16x32xf32>
    %c0_12 = arith.constant 0 : index
    %c0_13 = arith.constant 0 : index
    %c0_14 = arith.constant 0 : index
    %19 = vector.load %arg7[%c0_12, %c0_13, %c0_14] : memref<4x16x32xf32, #tpu.memory_space<vmem>>, vector<4x16x32xf32>
    tpu.vector_store %arg7[%c0_12, %c0_13, %c0_14], %18 {strides = array<i32>} : memref<4x16x32xf32, #tpu.memory_space<vmem>>, vector<4x16x32xf32>,
    %c0_15 = arith.constant 0 : index
    %c0_16 = arith.constant 0 : index
    %c0_17 = arith.constant 0 : index
    %c0_18 = arith.constant 0 : index
    %20 = vector.load %arg3[%c0_15, %c0_16, %c0_17, %c0_18] : memref<2x4x8x16xf32, #tpu.memory_space<vmem>>, vector<1x1x8x16xf32>
    %21 = vector.shape_cast %20 : vector<1x1x8x16xf32> to vector<8x16xf32>
    %c0_19 = arith.constant 0 : index
    %c0_20 = arith.constant 0 : index
    %c0_21 = arith.constant 0 : index
    %22 = vector.load %arg7[%c0_19, %c0_20, %c0_21] : memref<4x16x32xf32, #tpu.memory_space<vmem>>, vector<1x8x16xf32>
    %23 = vector.shape_cast %22 : vector<1x8x16xf32> to vector<8x16xf32>
    %24 = vector.shape_cast %21 : vector<8x16xf32> to vector<1x8x16xf32>
    tpu.vector_store %arg7[%c0_19, %c0_20, %c0_21], %24 {strides = array<i32>} : memref<4x16x32xf32, #tpu.memory_space<vmem>>, vector<1x8x16xf32>,
    %c1 = arith.constant 1 : index
    %c0_22 = arith.constant 0 : index
    %c0_23 = arith.constant 0 : index
    %c0_24 = arith.constant 0 : index
    %25 = vector.load %arg3[%c1, %c0_22, %c0_23, %c0_24] : memref<2x4x8x16xf32, #tpu.memory_space<vmem>>, vector<1x1x8x16xf32>
    %26 = vector.shape_cast %25 : vector<1x1x8x16xf32> to vector<8x16xf32>
    %c0_25 = arith.constant 0 : index
    %c8 = arith.constant 8 : index
    %c16 = arith.constant 16 : index
    %27 = vector.load %arg7[%c0_25, %c8, %c16] : memref<4x16x32xf32, #tpu.memory_space<vmem>>, vector<1x8x16xf32>
    %28 = vector.shape_cast %27 : vector<1x8x16xf32> to vector<8x16xf32>
    %29 = vector.shape_cast %26 : vector<8x16xf32> to vector<1x8x16xf32>
    tpu.vector_store %arg7[%c0_25, %c8, %c16], %29 {strides = array<i32>} : memref<4x16x32xf32, #tpu.memory_space<vmem>>, vector<1x8x16xf32>,
    %c0_26 = arith.constant 0 : index
    %c1_27 = arith.constant 1 : index
    %c0_28 = arith.constant 0 : index
    %c0_29 = arith.constant 0 : index
    %30 = vector.load %arg3[%c0_26, %c1_27, %c0_28, %c0_29] : memref<2x4x8x16xf32, #tpu.memory_space<vmem>>, vector<1x1x8x16xf32>
    %31 = vector.shape_cast %30 : vector<1x1x8x16xf32> to vector<8x16xf32>
    %c1_30 = arith.constant 1 : index
    %c0_31 = arith.constant 0 : index
    %c0_32 = arith.constant 0 : index
    %32 = vector.load %arg7[%c1_30, %c0_31, %c0_32] : memref<4x16x32xf32, #tpu.memory_space<vmem>>, vector<1x8x16xf32>
    %33 = vector.shape_cast %32 : vector<1x8x16xf32> to vector<8x16xf32>
    %34 = vector.shape_cast %31 : vector<8x16xf32> to vector<1x8x16xf32>
    tpu.vector_store %arg7[%c1_30, %c0_31, %c0_32], %34 {strides = array<i32>} : memref<4x16x32xf32, #tpu.memory_space<vmem>>, vector<1x8x16xf32>,
    %c1_33 = arith.constant 1 : index
    %c1_34 = arith.constant 1 : index
    %c0_35 = arith.constant 0 : index
    %c0_36 = arith.constant 0 : index
    %35 = vector.load %arg3[%c1_33, %c1_34, %c0_35, %c0_36] : memref<2x4x8x16xf32, #tpu.memory_space<vmem>>, vector<1x1x8x16xf32>
    %36 = vector.shape_cast %35 : vector<1x1x8x16xf32> to vector<8x16xf32>
    %c1_37 = arith.constant 1 : index
    %c8_38 = arith.constant 8 : index
    %c16_39 = arith.constant 16 : index
    %37 = vector.load %arg7[%c1_37, %c8_38, %c16_39] : memref<4x16x32xf32, #tpu.memory_space<vmem>>, vector<1x8x16xf32>
    %38 = vector.shape_cast %37 : vector<1x8x16xf32> to vector<8x16xf32>
    %39 = vector.shape_cast %36 : vector<8x16xf32> to vector<1x8x16xf32>
    tpu.vector_store %arg7[%c1_37, %c8_38, %c16_39], %39 {strides = array<i32>} : memref<4x16x32xf32, #tpu.memory_space<vmem>>, vector<1x8x16xf32>,
    %c0_40 = arith.constant 0 : index
    %c2 = arith.constant 2 : index
    %c0_41 = arith.constant 0 : index
    %c0_42 = arith.constant 0 : index
    %40 = vector.load %arg3[%c0_40, %c2, %c0_41, %c0_42] : memref<2x4x8x16xf32, #tpu.memory_space<vmem>>, vector<1x1x8x16xf32>
    %41 = vector.shape_cast %40 : vector<1x1x8x16xf32> to vector<8x16xf32>
    %c2_43 = arith.constant 2 : index
    %c0_44 = arith.constant 0 : index
    %c0_45 = arith.constant 0 : index
    %42 = vector.load %arg7[%c2_43, %c0_44, %c0_45] : memref<4x16x32xf32, #tpu.memory_space<vmem>>, vector<1x8x16xf32>
    %43 = vector.shape_cast %42 : vector<1x8x16xf32> to vector<8x16xf32>
    %44 = vector.shape_cast %41 : vector<8x16xf32> to vector<1x8x16xf32>
    tpu.vector_store %arg7[%c2_43, %c0_44, %c0_45], %44 {strides = array<i32>} : memref<4x16x32xf32, #tpu.memory_space<vmem>>, vector<1x8x16xf32>,
    %c1_46 = arith.constant 1 : index
    %c2_47 = arith.constant 2 : index
    %c0_48 = arith.constant 0 : index
    %c0_49 = arith.constant 0 : index
    %45 = vector.load %arg3[%c1_46, %c2_47, %c0_48, %c0_49] : memref<2x4x8x16xf32, #tpu.memory_space<vmem>>, vector<1x1x8x16xf32>
    %46 = vector.shape_cast %45 : vector<1x1x8x16xf32> to vector<8x16xf32>
    %c2_50 = arith.constant 2 : index
    %c8_51 = arith.constant 8 : index
    %c16_52 = arith.constant 16 : index
    %47 = vector.load %arg7[%c2_50, %c8_51, %c16_52] : memref<4x16x32xf32, #tpu.memory_space<vmem>>, vector<1x8x16xf32>
    %48 = vector.shape_cast %47 : vector<1x8x16xf32> to vector<8x16xf32>
    %49 = vector.shape_cast %46 : vector<8x16xf32> to vector<1x8x16xf32>
    tpu.vector_store %arg7[%c2_50, %c8_51, %c16_52], %49 {strides = array<i32>} : memref<4x16x32xf32, #tpu.memory_space<vmem>>, vector<1x8x16xf32>,
    %c0_53 = arith.constant 0 : index
    %c3 = arith.constant 3 : index
    %c0_54 = arith.constant 0 : index
    %c0_55 = arith.constant 0 : index
    %50 = vector.load %arg3[%c0_53, %c3, %c0_54, %c0_55] : memref<2x4x8x16xf32, #tpu.memory_space<vmem>>, vector<1x1x8x16xf32>
    %51 = vector.shape_cast %50 : vector<1x1x8x16xf32> to vector<8x16xf32>
    %c3_56 = arith.constant 3 : index
    %c0_57 = arith.constant 0 : index
    %c0_58 = arith.constant 0 : index
    %52 = vector.load %arg7[%c3_56, %c0_57, %c0_58] : memref<4x16x32xf32, #tpu.memory_space<vmem>>, vector<1x8x16xf32>
    %53 = vector.shape_cast %52 : vector<1x8x16xf32> to vector<8x16xf32>
    %54 = vector.shape_cast %51 : vector<8x16xf32> to vector<1x8x16xf32>
    tpu.vector_store %arg7[%c3_56, %c0_57, %c0_58], %54 {strides = array<i32>} : memref<4x16x32xf32, #tpu.memory_space<vmem>>, vector<1x8x16xf32>,
    %c1_59 = arith.constant 1 : index
    %c3_60 = arith.constant 3 : index
    %c0_61 = arith.constant 0 : index
    %c0_62 = arith.constant 0 : index
    %55 = vector.load %arg3[%c1_59, %c3_60, %c0_61, %c0_62] : memref<2x4x8x16xf32, #tpu.memory_space<vmem>>, vector<1x1x8x16xf32>
    %56 = vector.shape_cast %55 : vector<1x1x8x16xf32> to vector<8x16xf32>
    %c3_63 = arith.constant 3 : index
    %c8_64 = arith.constant 8 : index
    %c16_65 = arith.constant 16 : index
    %57 = vector.load %arg7[%c3_63, %c8_64, %c16_65] : memref<4x16x32xf32, #tpu.memory_space<vmem>>, vector<1x8x16xf32>
    %58 = vector.shape_cast %57 : vector<1x8x16xf32> to vector<8x16xf32>
    %59 = vector.shape_cast %56 : vector<8x16xf32> to vector<1x8x16xf32>
    tpu.vector_store %arg7[%c3_63, %c8_64, %c16_65], %59 {strides = array<i32>} : memref<4x16x32xf32, #tpu.memory_space<vmem>>, vector<1x8x16xf32>,
    %60 = vector.extract_strided_slice %15 {offsets = [0, 0], sizes = [16, 8], strides = [1, 1]} : vector<16x32xbf16> to vector<16x8xbf16>
    %61 = vector.extract_strided_slice %16 {offsets = [0, 0], sizes = [32, 8], strides = [1, 1]} : vector<32x32xbf16> to vector<32x8xbf16>
    %62 = vector.extract_strided_slice %17 {offsets = [0, 0], sizes = [32, 8], strides = [1, 1]} : vector<32x32xbf16> to vector<32x8xbf16>
    %cst_66 = arith.constant dense<0.000000e+00> : vector<16x32xf32>
    %63 = tpu.matmul %60, %61, %cst_66 {dimension_numbers = #tpu.dot_dimension_numbers<[1], [1], [0], [0], [0, 0, 1, 0], [], []>} : vector<16x8xbf16>, vector<32x8xbf16>, vector<16x32xf32> -> vector<16x32xf32>
    %c0_67 = arith.constant 0 : index
    %c0_68 = arith.constant 0 : index
    %c0_69 = arith.constant 0 : index
    %64 = vector.load %arg7[%c0_67, %c0_68, %c0_69] : memref<4x16x32xf32, #tpu.memory_space<vmem>>, vector<1x16x32xf32>
    %65 = vector.shape_cast %64 : vector<1x16x32xf32> to vector<16x32xf32>
    %66 = arith.addf %63, %65 : vector<16x32xf32>
    %cst_70 = arith.constant dense<0xFF800000> : vector<16xf32>
    %67 = vector.multi_reduction <maximumf>, %66, %cst_70 [1] : vector<16x32xf32> to vector<16xf32>
    %68 = vector.shape_cast %67 : vector<16xf32> to vector<16x1xf32>
    %69 = vector.broadcast %68 : vector<16x1xf32> to vector<16x32xf32>
    %70 = arith.subf %66, %69 : vector<16x32xf32>
    %71 = math.exp %70 : vector<16x32xf32>
    %cst_71 = arith.constant dense<0.000000e+00> : vector<16xf32>
    %72 = vector.multi_reduction <add>, %71, %cst_71 [1] : vector<16x32xf32> to vector<16xf32>
    %73 = vector.shape_cast %72 : vector<16xf32> to vector<16x1xf32>
    %74 = arith.truncf %71 : vector<16x32xf32> to vector<16x32xbf16>
    %cst_72 = arith.constant dense<0.000000e+00> : vector<16x8xf32>
    %75 = tpu.matmul %74, %62, %cst_72 {dimension_numbers = #tpu.dot_dimension_numbers<[1], [0], [0], [1], [0, 0, 1, 1], [], []>} : vector<16x32xbf16>, vector<32x8xbf16>, vector<16x8xf32> -> vector<16x8xf32>
    %76 = tpu.reciprocal %73 {approx = true} : vector<16x1xf32> -> vector<16x1xf32>
    %77 = vector.broadcast %76 : vector<16x1xf32> to vector<16x8xf32>
    %78 = arith.mulf %75, %77 : vector<16x8xf32>
    %c0_73 = arith.constant 0 : index
    %c0_74 = arith.constant 0 : index
    %79 = vector.load %arg8[%c0_73, %c0_74] : memref<16x32xf32, #tpu.memory_space<vmem>>, vector<16x8xf32>
    tpu.vector_store %arg8[%c0_73, %c0_74], %78 {strides = array<i32>} : memref<16x32xf32, #tpu.memory_space<vmem>>, vector<16x8xf32>,
    %80 = vector.extract_strided_slice %15 {offsets = [0, 8], sizes = [16, 8], strides = [1, 1]} : vector<16x32xbf16> to vector<16x8xbf16>
    %81 = vector.extract_strided_slice %16 {offsets = [0, 8], sizes = [32, 8], strides = [1, 1]} : vector<32x32xbf16> to vector<32x8xbf16>
    %82 = vector.extract_strided_slice %17 {offsets = [0, 8], sizes = [32, 8], strides = [1, 1]} : vector<32x32xbf16> to vector<32x8xbf16>
    %cst_75 = arith.constant dense<0.000000e+00> : vector<16x32xf32>
    %83 = tpu.matmul %80, %81, %cst_75 {dimension_numbers = #tpu.dot_dimension_numbers<[1], [1], [0], [0], [0, 0, 1, 0], [], []>} : vector<16x8xbf16>, vector<32x8xbf16>, vector<16x32xf32> -> vector<16x32xf32>
    %c1_76 = arith.constant 1 : index
    %c0_77 = arith.constant 0 : index
    %c0_78 = arith.constant 0 : index
    %84 = vector.load %arg7[%c1_76, %c0_77, %c0_78] : memref<4x16x32xf32, #tpu.memory_space<vmem>>, vector<1x16x32xf32>
    %85 = vector.shape_cast %84 : vector<1x16x32xf32> to vector<16x32xf32>
    %86 = arith.addf %83, %85 : vector<16x32xf32>
    %cst_79 = arith.constant dense<0xFF800000> : vector<16xf32>
    %87 = vector.multi_reduction <maximumf>, %86, %cst_79 [1] : vector<16x32xf32> to vector<16xf32>
    %88 = vector.shape_cast %87 : vector<16xf32> to vector<16x1xf32>
    %89 = vector.broadcast %88 : vector<16x1xf32> to vector<16x32xf32>
    %90 = arith.subf %86, %89 : vector<16x32xf32>
    %91 = math.exp %90 : vector<16x32xf32>
    %cst_80 = arith.constant dense<0.000000e+00> : vector<16xf32>
    %92 = vector.multi_reduction <add>, %91, %cst_80 [1] : vector<16x32xf32> to vector<16xf32>
    %93 = vector.shape_cast %92 : vector<16xf32> to vector<16x1xf32>
    %94 = arith.truncf %91 : vector<16x32xf32> to vector<16x32xbf16>
    %cst_81 = arith.constant dense<0.000000e+00> : vector<16x8xf32>
    %95 = tpu.matmul %94, %82, %cst_81 {dimension_numbers = #tpu.dot_dimension_numbers<[1], [0], [0], [1], [0, 0, 1, 1], [], []>} : vector<16x32xbf16>, vector<32x8xbf16>, vector<16x8xf32> -> vector<16x8xf32>
    %96 = tpu.reciprocal %93 {approx = true} : vector<16x1xf32> -> vector<16x1xf32>
    %97 = vector.broadcast %96 : vector<16x1xf32> to vector<16x8xf32>
    %98 = arith.mulf %95, %97 : vector<16x8xf32>
    %c0_82 = arith.constant 0 : index
    %c8_83 = arith.constant 8 : index
    %99 = vector.load %arg8[%c0_82, %c8_83] : memref<16x32xf32, #tpu.memory_space<vmem>>, vector<16x8xf32>
    tpu.vector_store %arg8[%c0_82, %c8_83], %98 {strides = array<i32>} : memref<16x32xf32, #tpu.memory_space<vmem>>, vector<16x8xf32>,
    %100 = vector.extract_strided_slice %15 {offsets = [0, 16], sizes = [16, 8], strides = [1, 1]} : vector<16x32xbf16> to vector<16x8xbf16>
    %101 = vector.extract_strided_slice %16 {offsets = [0, 16], sizes = [32, 8], strides = [1, 1]} : vector<32x32xbf16> to vector<32x8xbf16>
    %102 = vector.extract_strided_slice %17 {offsets = [0, 16], sizes = [32, 8], strides = [1, 1]} : vector<32x32xbf16> to vector<32x8xbf16>
    %cst_84 = arith.constant dense<0.000000e+00> : vector<16x32xf32>
    %103 = tpu.matmul %100, %101, %cst_84 {dimension_numbers = #tpu.dot_dimension_numbers<[1], [1], [0], [0], [0, 0, 1, 0], [], []>} : vector<16x8xbf16>, vector<32x8xbf16>, vector<16x32xf32> -> vector<16x32xf32>
    %c2_85 = arith.constant 2 : index
    %c0_86 = arith.constant 0 : index
    %c0_87 = arith.constant 0 : index
    %104 = vector.load %arg7[%c2_85, %c0_86, %c0_87] : memref<4x16x32xf32, #tpu.memory_space<vmem>>, vector<1x16x32xf32>
    %105 = vector.shape_cast %104 : vector<1x16x32xf32> to vector<16x32xf32>
    %106 = arith.addf %103, %105 : vector<16x32xf32>
    %cst_88 = arith.constant dense<0xFF800000> : vector<16xf32>
    %107 = vector.multi_reduction <maximumf>, %106, %cst_88 [1] : vector<16x32xf32> to vector<16xf32>
    %108 = vector.shape_cast %107 : vector<16xf32> to vector<16x1xf32>
    %109 = vector.broadcast %108 : vector<16x1xf32> to vector<16x32xf32>
    %110 = arith.subf %106, %109 : vector<16x32xf32>
    %111 = math.exp %110 : vector<16x32xf32>
    %cst_89 = arith.constant dense<0.000000e+00> : vector<16xf32>
    %112 = vector.multi_reduction <add>, %111, %cst_89 [1] : vector<16x32xf32> to vector<16xf32>
    %113 = vector.shape_cast %112 : vector<16xf32> to vector<16x1xf32>
    %114 = arith.truncf %111 : vector<16x32xf32> to vector<16x32xbf16>
    %cst_90 = arith.constant dense<0.000000e+00> : vector<16x8xf32>
    %115 = tpu.matmul %114, %102, %cst_90 {dimension_numbers = #tpu.dot_dimension_numbers<[1], [0], [0], [1], [0, 0, 1, 1], [], []>} : vector<16x32xbf16>, vector<32x8xbf16>, vector<16x8xf32> -> vector<16x8xf32>
    %116 = tpu.reciprocal %113 {approx = true} : vector<16x1xf32> -> vector<16x1xf32>
    %117 = vector.broadcast %116 : vector<16x1xf32> to vector<16x8xf32>
    %118 = arith.mulf %115, %117 : vector<16x8xf32>
    %c0_91 = arith.constant 0 : index
    %c16_92 = arith.constant 16 : index
    %119 = vector.load %arg8[%c0_91, %c16_92] : memref<16x32xf32, #tpu.memory_space<vmem>>, vector<16x8xf32>
    tpu.vector_store %arg8[%c0_91, %c16_92], %118 {strides = array<i32>} : memref<16x32xf32, #tpu.memory_space<vmem>>, vector<16x8xf32>,
    %120 = vector.extract_strided_slice %15 {offsets = [0, 24], sizes = [16, 8], strides = [1, 1]} : vector<16x32xbf16> to vector<16x8xbf16>
    %121 = vector.extract_strided_slice %16 {offsets = [0, 24], sizes = [32, 8], strides = [1, 1]} : vector<32x32xbf16> to vector<32x8xbf16>
    %122 = vector.extract_strided_slice %17 {offsets = [0, 24], sizes = [32, 8], strides = [1, 1]} : vector<32x32xbf16> to vector<32x8xbf16>
    %cst_93 = arith.constant dense<0.000000e+00> : vector<16x32xf32>
    %123 = tpu.matmul %120, %121, %cst_93 {dimension_numbers = #tpu.dot_dimension_numbers<[1], [1], [0], [0], [0, 0, 1, 0], [], []>} : vector<16x8xbf16>, vector<32x8xbf16>, vector<16x32xf32> -> vector<16x32xf32>
    %c3_94 = arith.constant 3 : index
    %c0_95 = arith.constant 0 : index
    %c0_96 = arith.constant 0 : index
    %124 = vector.load %arg7[%c3_94, %c0_95, %c0_96] : memref<4x16x32xf32, #tpu.memory_space<vmem>>, vector<1x16x32xf32>
    %125 = vector.shape_cast %124 : vector<1x16x32xf32> to vector<16x32xf32>
    %126 = arith.addf %123, %125 : vector<16x32xf32>
    %cst_97 = arith.constant dense<0xFF800000> : vector<16xf32>
    %127 = vector.multi_reduction <maximumf>, %126, %cst_97 [1] : vector<16x32xf32> to vector<16xf32>
    %128 = vector.shape_cast %127 : vector<16xf32> to vector<16x1xf32>
    %129 = vector.broadcast %128 : vector<16x1xf32> to vector<16x32xf32>
    %130 = arith.subf %126, %129 : vector<16x32xf32>
    %131 = math.exp %130 : vector<16x32xf32>
    %cst_98 = arith.constant dense<0.000000e+00> : vector<16xf32>
    %132 = vector.multi_reduction <add>, %131, %cst_98 [1] : vector<16x32xf32> to vector<16xf32>
    %133 = vector.shape_cast %132 : vector<16xf32> to vector<16x1xf32>
    %134 = arith.truncf %131 : vector<16x32xf32> to vector<16x32xbf16>
    %cst_99 = arith.constant dense<0.000000e+00> : vector<16x8xf32>
    %135 = tpu.matmul %134, %122, %cst_99 {dimension_numbers = #tpu.dot_dimension_numbers<[1], [0], [0], [1], [0, 0, 1, 1], [], []>} : vector<16x32xbf16>, vector<32x8xbf16>, vector<16x8xf32> -> vector<16x8xf32>
    %136 = tpu.reciprocal %133 {approx = true} : vector<16x1xf32> -> vector<16x1xf32>
    %137 = vector.broadcast %136 : vector<16x1xf32> to vector<16x8xf32>
    %138 = arith.mulf %135, %137 : vector<16x8xf32>
    %c0_100 = arith.constant 0 : index
    %c24 = arith.constant 24 : index
    %139 = vector.load %arg8[%c0_100, %c24] : memref<16x32xf32, #tpu.memory_space<vmem>>, vector<16x8xf32>
    tpu.vector_store %arg8[%c0_100, %c24], %138 {strides = array<i32>} : memref<16x32xf32, #tpu.memory_space<vmem>>, vector<16x8xf32>,
    %c0_101 = arith.constant 0 : index
    %c0_102 = arith.constant 0 : index
    %140 = vector.load %arg8[%c0_101, %c0_102] : memref<16x32xf32, #tpu.memory_space<vmem>>, vector<16x32xf32>
    %141 = arith.truncf %140 : vector<16x32xf32> to vector<16x32xbf16>
    %c0_103 = arith.constant 0 : index
    %c0_104 = arith.constant 0 : index
    %142 = vector.load %arg5[%c0_103, %c0_104] : memref<32x32xbf16, #tpu.memory_space<vmem>>, vector<32x32xbf16>
    %cst_105 = arith.constant dense<0.000000e+00> : vector<16x32xf32>
    %143 = tpu.matmul %141, %142, %cst_105 {dimension_numbers = #tpu.dot_dimension_numbers<[1], [0], [0], [1], [0, 0, 1, 1], [], []>} : vector<16x32xbf16>, vector<32x32xbf16>, vector<16x32xf32> -> vector<16x32xf32>
    %144 = vector.shape_cast %143 : vector<16x32xf32> to vector<2x8x32xf32>
    %c0_106 = arith.constant 0 : index
    %c0_107 = arith.constant 0 : index
    %c0_108 = arith.constant 0 : index
    %145 = vector.load %arg6[%c0_106, %c0_107, %c0_108] : memref<2x8x32xf32, #tpu.memory_space<vmem>>, vector<2x8x32xf32>
    tpu.vector_store %arg6[%c0_106, %c0_107, %c0_108], %144 {strides = array<i32>} : memref<2x8x32xf32, #tpu.memory_space<vmem>>, vector<2x8x32xf32>,
    return
  }
}

</mosaic_0001>

<llo_original>
// kernel: cross_attention.1
$region0: #{cross_attention.1}
  #allocation0 [shape = 'u32[]', space=smem, size = 0x4, offset = 0x4, fixed_abs, tag = 'smem constant byte address 0x4 - core index']
  #allocation1 [shape = 'u32[144,128]{1,0:T(1,128)}', space=vmem, size = 0x12000, scoped, tag = 'internal scratch']
  #allocation2 [shape = 'f32[4,16,32]{2,1,0:T(8,128)}', space=vmem, size = 0x8000, scoped, tag = 'scratch operand']
  #allocation3 [shape = 'f32[16,32]{1,0:T(8,128)}', space=vmem, size = 0x2000, scoped, tag = 'scratch operand']
  %s0 = inlined_call_operand.hbm [shape: f32[2,8,32], index: 0, kind: input, shape index: {}]
  %s1 = inlined_call_operand.hbm [shape: f32[2,16,32], index: 1, kind: input, shape index: {}]
  %s2 = inlined_call_operand.hbm [shape: f32[2,16,32], index: 2, kind: input, shape index: {}]
  %s3 = inlined_call_operand.hbm [shape: f32[2,4,8,16], index: 3, kind: input, shape index: {}]
  %s4 = inlined_call_operand.hbm [shape: bf16[32,96], index: 4, kind: input, shape index: {}]
  %s5 = inlined_call_operand.hbm [shape: bf16[32,32], index: 5, kind: input, shape index: {}]
  %s6 = inlined_call_operand.hbm [shape: f32[2,8,32], index: 6, kind: output, shape index: {}]
  %s7 = sld [smem:[#allocation0]]
  $region58: #{cross_attention.1} parent=0
    _
  %s9 = ssub.s32 1, %s7
  %s10 = scalar_select 0, %s9, %s7
  $region1: #{cross_attention.1} parent=0
    #allocation4 [shape = 'u8[8192]{0}', space=vmem, size = 0x2000, scoped, tag = 'input window, operand 0, single buffered']
    #allocation5 [shape = 's32[1]{0}', space=sflag, size = 0x4, scoped, tag = 'scoped memory for cross_attention.1']
    #allocation6 [shape = 's32[1]{0}', space=sflag, size = 0x4, scoped, tag = 'scoped memory for cross_attention.1']
    #allocation7 [shape = 'u8[16384]{0}', space=vmem, size = 0x4000, scoped, tag = 'input window, operand 1, single buffered']
    #allocation8 [shape = 's32[1]{0}', space=sflag, size = 0x4, scoped, tag = 'scoped memory for cross_attention.1']
    #allocation9 [shape = 'u8[16384]{0}', space=vmem, size = 0x4000, scoped, tag = 'input window, operand 2, single buffered']
    #allocation10 [shape = 'u8[32768]{0}', space=vmem, size = 0x8000, scoped, tag = 'input window, operand 3, single buffered']
    #allocation11 [shape = 's32[1]{0}', space=sflag, size = 0x4, scoped, tag = 'scoped memory for cross_attention.1']
    #allocation12 [shape = 'u8[8192]{0}', space=vmem, size = 0x2000, scoped, tag = 'input window, operand 4, single buffered']
    #allocation13 [shape = 'u8[8192]{0}', space=vmem, size = 0x2000, scoped, tag = 'input window, operand 5, single buffered']
    #allocation14 [shape = 's32[1]{0}', space=sflag, size = 0x4, scoped, tag = 'scoped memory for cross_attention.1']
    #allocation15 [shape = 'u8[8192]{0}', space=vmem, size = 0x2000, scoped, tag = 'output window, operand 0, single buffered']
    %11 = vsyncpa [#allocation5], 0
    %12 = vsyncpa [#allocation8], 0
    %13 = vsyncpa [#allocation11], 0
    %14 = vsyncpa [#allocation14], 0
    %15 = vsyncpa [#allocation6], 0
    // Predicated region
    $region2: #{cross_attention.1} parent=1 // pred_check
      _
    $region3: #{cross_attention.1} parent=1 // pred_check_branch
      %17 = sbr.rel (0) target = $region5
    $region4: #{cross_attention.1} parent=1 // pred_region
      %s19 = ssub.s32 256, 256
      %20 = vsyncadd [#allocation5], %s19
      %s21 = sshll.u32 [#allocation4], 4
      %s22 = int_to_ptr.vmem [resolvable:$true] %s21
      %27 = dma.hbm_to_vmem [thread:$0]  %s0, 256, %s22, [#allocation5], 128, 128, 8
    $region5: #{cross_attention.1} parent=1 // pred_fallthru
      _
    // Predicated region
    $region6: #{cross_attention.1} parent=1 // pred_check
      _
    $region7: #{cross_attention.1} parent=1 // pred_check_branch
      %29 = sbr.rel (0) target = $region9
    $region8: #{cross_attention.1} parent=1 // pred_region
      %s31 = ssub.s32 512, 512
      %32 = vsyncadd [#allocation8], %s31
      %s33 = sshll.u32 [#allocation7], 4
      %s34 = int_to_ptr.vmem [resolvable:$true] %s33
      %39 = dma.hbm_to_vmem [thread:$0]  %s1, 512, %s34, [#allocation8], 128, 128, 8
    $region9: #{cross_attention.1} parent=1 // pred_fallthru
      _
    // Predicated region
    $region10: #{cross_attention.1} parent=1 // pred_check
      _
    $region11: #{cross_attention.1} parent=1 // pred_check_branch
      %41 = sbr.rel (0) target = $region13
    $region12: #{cross_attention.1} parent=1 // pred_region
      %s43 = ssub.s32 512, 512
      %44 = vsyncadd [#allocation8], %s43
      %s45 = sshll.u32 [#allocation9], 4
      %s46 = int_to_ptr.vmem [resolvable:$true] %s45
      %51 = dma.hbm_to_vmem [thread:$0]  %s2, 512, %s46, [#allocation8], 128, 128, 8
    $region13: #{cross_attention.1} parent=1 // pred_fallthru
      _
    // Predicated region
    $region14: #{cross_attention.1} parent=1 // pred_check
      _
    $region15: #{cross_attention.1} parent=1 // pred_check_branch
      %53 = sbr.rel (0) target = $region17
    $region16: #{cross_attention.1} parent=1 // pred_region
      %s55 = ssub.s32 1024, 1024
      %56 = vsyncadd [#allocation11], %s55
      %s57 = sshll.u32 [#allocation10], 4
      %s58 = int_to_ptr.vmem [resolvable:$true] %s57
      %63 = dma.hbm_to_vmem [thread:$0]  %s3, 1024, %s58, [#allocation11], 128, 128, 8
    $region17: #{cross_attention.1} parent=1 // pred_fallthru
      _
    // Predicated region
    $region18: #{cross_attention.1} parent=1 // pred_check
      _
    $region19: #{cross_attention.1} parent=1 // pred_check_branch
      %65 = sbr.rel (0) target = $region21
    $region20: #{cross_attention.1} parent=1 // pred_region
      %s67 = ssub.s32 256, 256
      %68 = vsyncadd [#allocation11], %s67
      %s69 = sshll.u32 [#allocation12], 4
      %s70 = int_to_ptr.vmem [resolvable:$true] %s69
      %75 = dma.hbm_to_vmem [thread:$0]  %s4, 256, %s70, [#allocation11], 64, 64, 4
    $region21: #{cross_attention.1} parent=1 // pred_fallthru
      _
    // Predicated region
    $region22: #{cross_attention.1} parent=1 // pred_check
      _
    $region23: #{cross_attention.1} parent=1 // pred_check_branch
      %77 = sbr.rel (0) target = $region25
    $region24: #{cross_attention.1} parent=1 // pred_region
      %s79 = ssub.s32 256, 256
      %80 = vsyncadd [#allocation14], %s79
      %s81 = sshll.u32 [#allocation13], 4
      %s82 = int_to_ptr.vmem [resolvable:$true] %s81
      %87 = dma.hbm_to_vmem [thread:$0]  %s5, 256, %s82, [#allocation14], 64, 64, 4
    $region25: #{cross_attention.1} parent=1 // pred_fallthru
      _
    // Predicated region
    $region26: #{cross_attention.1} parent=1 // pred_check
      _
    $region27: #{cross_attention.1} parent=1 // pred_check_branch
      %89 = sbr.rel (0) target = $region29
    $region28: #{cross_attention.1} parent=1 // pred_region
      %90 = dma.done [#allocation5], 256
    $region29: #{cross_attention.1} parent=1 // pred_fallthru
      _
    // Predicated region
    $region30: #{cross_attention.1} parent=1 // pred_check
      _
    $region31: #{cross_attention.1} parent=1 // pred_check_branch
      %92 = sbr.rel (0) target = $region33
    $region32: #{cross_attention.1} parent=1 // pred_region
      %93 = dma.done [#allocation8], 512
    $region33: #{cross_attention.1} parent=1 // pred_fallthru
      _
    // Predicated region
    $region34: #{cross_attention.1} parent=1 // pred_check
      _
    $region35: #{cross_attention.1} parent=1 // pred_check_branch
      %95 = sbr.rel (0) target = $region37
    $region36: #{cross_attention.1} parent=1 // pred_region
      %96 = dma.done [#allocation8], 512
    $region37: #{cross_attention.1} parent=1 // pred_fallthru
      _
    // Predicated region
    $region38: #{cross_attention.1} parent=1 // pred_check
      _
    $region39: #{cross_attention.1} parent=1 // pred_check_branch
      %98 = sbr.rel (0) target = $region41
    $region40: #{cross_attention.1} parent=1 // pred_region
      %99 = dma.done [#allocation11], 1024
    $region41: #{cross_attention.1} parent=1 // pred_fallthru
      _
    // Predicated region
    $region42: #{cross_attention.1} parent=1 // pred_check
      _
    $region43: #{cross_attention.1} parent=1 // pred_check_branch
      %101 = sbr.rel (0) target = $region45
    $region44: #{cross_attention.1} parent=1 // pred_region
      %102 = dma.done [#allocation11], 256
    $region45: #{cross_attention.1} parent=1 // pred_fallthru
      _
    // Predicated region
    $region46: #{cross_attention.1} parent=1 // pred_check
      _
    $region47: #{cross_attention.1} parent=1 // pred_check_branch
      %104 = sbr.rel (0) target = $region49
    $region48: #{cross_attention.1} parent=1 // pred_region
      %105 = dma.done [#allocation14], 256
    $region49: #{cross_attention.1} parent=1 // pred_fallthru
      _
    %v107 = vld [vmem:[#allocation4] sm:$0xff]
    %v108 = vld [vmem:[#allocation4 + $0x8] sm:$0xff]
    %v109 = vld [vmem:[#allocation7] sm:$0xff]
    %v110 = vld [vmem:[#allocation7 + $0x8] sm:$0xff]
    %v111 = vld [vmem:[#allocation7 + $0x10] sm:$0xff]
    %v112 = vld [vmem:[#allocation7 + $0x18] sm:$0xff]
    %v113 = vld [vmem:[#allocation9] sm:$0xff]
    %v114 = vld [vmem:[#allocation9 + $0x8] sm:$0xff]
    %v115 = vld [vmem:[#allocation9 + $0x10] sm:$0xff]
    %v116 = vld [vmem:[#allocation9 + $0x18] sm:$0xff]
    %v117 = vpack.c.bf16 %v108, %v107
    %v118 = vpack.c.bf16 %v110, %v109
    %v119 = vpack.c.bf16 %v112, %v111
    %v120 = vpack.c.bf16 %v114, %v113
    %v121 = vpack.c.bf16 %v116, %v115
    %v122 = vld [vmem:[#allocation12] sm:$0xf]
    %v123 = vld [vmem:[#allocation12 + $0x4] sm:$0xf]
    %v124 = vld [vmem:[#allocation12 + $0x8] sm:$0xf]
    %v125 = vld [vmem:[#allocation12 + $0xc] sm:$0xf]
    %v130 = vunpack.c.l.b16 %v122
    %v131 = vunpack.c.l.b16 %v123
    %v132 = vunpack.c.l.b16 %v124
    %v133 = vunpack.c.l.b16 %v125
    %v134 = vpack.c.b16 %v131, %v130
    %v135 = vpack.c.b16 %v133, %v132
    %vm138 = vcmask 261120
    %v140 = vsel %vm138, %v117, 0
    %v143 = vsel %vm138, %v118, 0
    %v146 = vsel %vm138, %v119, 0
    %v149 = vsel %vm138, %v120, 0
    %v152 = vsel %vm138, %v121, 0
    %154 = vmatprep.subr.bf16.mxu0 0
    %155 = vmatpush1.bf16.msra.mxu0 0
    %156 = vmatprep.subr.bf16.mxu0 0
    %157 = vmatpush1.bf16.msra.mxu0 0
    %158 = vmatprep.subr.bf16.mxu0 0
    %159 = vmatpush1.bf16.msra.mxu0 0
    %160 = vmatprep.subr.bf16.mxu0 0
    %161 = vmatpush1.bf16.msra.mxu0 0
    %162 = vmatprep.subr.bf16.mxu0 0
    %163 = vmatpush1.bf16.msra.mxu0 0
    %164 = vmatprep.subr.bf16.mxu0 0
    %165 = vmatpush1.bf16.msra.mxu0 0
    %166 = vmatprep.subr.bf16.mxu0 0
    %167 = vmatpush1.bf16.msra.mxu0 %v135
    %168 = vmatprep.subr.bf16.mxu0 0
    %169 = vmatpush1.bf16.msra.mxu0 %v134
    %170 = vmatprep.subr.bf16.mxu0 0
    %171 = vmatpush2.bf16.msra.mxu0 0
    %172 = vmatprep.subr.bf16.mxu0 0
    %173 = vmatpush2.bf16.msra.mxu0 0
    %174 = vmatprep.subr.bf16.mxu0 0
    %175 = vmatpush2.bf16.msra.mxu0 0
    %176 = vmatprep.subr.bf16.mxu0 0
    %177 = vmatpush2.bf16.msra.mxu0 0
    %178 = vmatprep.subr.bf16.mxu0 0
    %179 = vmatpush2.bf16.msra.mxu0 0
    %180 = vmatprep.subr.bf16.mxu0 0
    %181 = vmatpush2.bf16.msra.mxu0 0
    %182 = vmatprep.subr.bf16.mxu0 0
    %183 = vmatpush2.bf16.msra.mxu0 0
    %184 = vmatprep.subr.bf16.mxu0 0
    %185 = vmatpush2.bf16.msra.mxu0 0
    %186 = vmatprep.mubr.bf16.mxu0 0
    %187 = vmatmul.mubr.bf16.gmra.mxu0 %v140
    %v188 = vpop.f32.mrf.mxu0
    %v189 = vadd.f32 0.0, %v188
    %v190 = vpop.f32.mrf.mxu0
    %v191 = vpop.f32.mrf.mxu0
    %v192 = vadd.f32 0.0, %v191
    %v193 = vpop.f32.mrf.mxu0
    %194 = vmatprep.mubr.bf16.mxu0 0
    %195 = vmatmul.mubr.bf16.gmra.mxu0 %v143
    %v196 = vpop.f32.mrf.mxu0
    %v197 = vadd.f32 0.0, %v196
    %v198 = vpop.f32.mrf.mxu0
    %v199 = vpop.f32.mrf.mxu0
    %v200 = vadd.f32 0.0, %v199
    %v201 = vpop.f32.mrf.mxu0
    %202 = vmatprep.mubr.bf16.mxu0 0
    %203 = vmatmul.mubr.bf16.gmra.mxu0 %v146
    %v204 = vpop.f32.mrf.mxu0
    %v205 = vadd.f32 0.0, %v204
    %v206 = vpop.f32.mrf.mxu0
    %v207 = vpop.f32.mrf.mxu0
    %v208 = vadd.f32 0.0, %v207
    %v209 = vpop.f32.mrf.mxu0
    %210 = vmatprep.mubr.bf16.mxu0 0
    %211 = vmatmul.mubr.bf16.gmra.mxu0 %v149
    %v212 = vpop.f32.mrf.mxu0
    %v213 = vadd.f32 0.0, %v212
    %v214 = vpop.f32.mrf.mxu0
    %v215 = vpop.f32.mrf.mxu0
    %v216 = vadd.f32 0.0, %v215
    %v217 = vpop.f32.mrf.mxu0
    %218 = vmatprep.mubr.bf16.mxu0 0
    %219 = vmatmul.mubr.bf16.gmra.mxu0 %v152
    %v220 = vpop.f32.mrf.mxu0
    %v221 = vadd.f32 0.0, %v220
    %v222 = vpop.f32.mrf.mxu0
    %v223 = vpop.f32.mrf.mxu0
    %v224 = vadd.f32 0.0, %v223
    %v225 = vpop.f32.mrf.mxu0
    %226 = vdwg.mxu0
    %v227 = vmul.f32 %v189, 0.35355338
    %v228 = vmul.f32 %v192, 0.35355338
    %v229 = vpack.c.bf16 %v228, %v227
    %v230 = vpack.c.bf16 %v200, %v197
    %v231 = vpack.c.bf16 %v208, %v205
    %v232 = vpack.c.bf16 %v216, %v213
    %v233 = vpack.c.bf16 %v224, %v221
    %234 = vst.msk [vmem:[#allocation2] sm:$0xff] %vm138, -1e+09
    %235 = vst.msk [vmem:[#allocation2 + $0x8] sm:$0xff] %vm138, -1e+09
    %236 = vst.msk [vmem:[#allocation2 + $0x10] sm:$0xff] %vm138, -1e+09
    %237 = vst.msk [vmem:[#allocation2 + $0x18] sm:$0xff] %vm138, -1e+09
    %238 = vst.msk [vmem:[#allocation2 + $0x20] sm:$0xff] %vm138, -1e+09
    %239 = vst.msk [vmem:[#allocation2 + $0x28] sm:$0xff] %vm138, -1e+09
    %240 = vst.msk [vmem:[#allocation2 + $0x30] sm:$0xff] %vm138, -1e+09
    %241 = vst.msk [vmem:[#allocation2 + $0x38] sm:$0xff] %vm138, -1e+09
    %v242 = vld [vmem:[#allocation10] sm:$0xff]
    %vm243 = vcmask 130048
    %244 = vst.msk [vmem:[#allocation2] sm:$0xff] %vm243, %v242
    %s245 = scalar_lea.vmem [#allocation10], 32
    %v246 = vld [vmem:[%s245] sm:$0xff]
    %248 = vrot.lane.b32.xlu0 %v246, 16
    %v249 = vpop.permute.xlu0 %248
    %vm251 = vcmask 261248
    %252 = vst.msk [vmem:[#allocation2 + $0x8] sm:$0xff] %vm251, %v249
    %s253 = scalar_lea.vmem [#allocation10], 8
    %v254 = vld [vmem:[%s253] sm:$0xff]
    %s255 = scalar_lea.vmem [#allocation2], 16
    %256 = vst.msk [vmem:[%s255] sm:$0xff] %vm243, %v254
    %s257 = scalar_lea.vmem [#allocation10], 40
    %v258 = vld [vmem:[%s257] sm:$0xff]
    %260 = vrot.lane.b32.xlu0 %v258, 16
    %v261 = vpop.permute.xlu0 %260
    %263 = vst.msk [vmem:[%s255 + $0x8] sm:$0xff] %vm251, %v261
    %s264 = scalar_lea.vmem [#allocation10], 16
    %v265 = vld [vmem:[%s264] sm:$0xff]
    %s266 = scalar_lea.vmem [#allocation2], 32
    %267 = vst.msk [vmem:[%s266] sm:$0xff] %vm243, %v265
    %s268 = scalar_lea.vmem [#allocation10], 48
    %v269 = vld [vmem:[%s268] sm:$0xff]
    %271 = vrot.lane.b32.xlu0 %v269, 16
    %v272 = vpop.permute.xlu0 %271
    %274 = vst.msk [vmem:[%s266 + $0x8] sm:$0xff] %vm251, %v272
    %s275 = scalar_lea.vmem [#allocation10], 24
    %v276 = vld [vmem:[%s275] sm:$0xff]
    %s277 = scalar_lea.vmem [#allocation2], 48
    %278 = vst.msk [vmem:[%s277] sm:$0xff] %vm243, %v276
    %s279 = scalar_lea.vmem [#allocation10], 56
    %v280 = vld [vmem:[%s279] sm:$0xff]
    %282 = vrot.lane.b32.xlu0 %v280, 16
    %v283 = vpop.permute.xlu0 %282
    %285 = vst.msk [vmem:[%s277 + $0x8] sm:$0xff] %vm251, %v283
    %v286 = vld [vmem:[#allocation2] sm:$0xff]
    %v287 = vld [vmem:[#allocation2 + $0x8] sm:$0xff]
    %290 = vrot.lane.b32.xlu0 %v230, 96
    %v291 = vpop.permute.xlu0 %290
    %292 = vrot.lane.b32.xlu0 %v231, 96
    %v293 = vpop.permute.xlu0 %292
    %vm294 = vcmask 64512
    %v296 = vsel %vm294, %v229, 0
    %v299 = vsel %vm294, %v291, 0
    %v302 = vsel %vm294, %v293, 0
    %304 = vmatprep.subr.bf16.mxu0 0
    %305 = vmatpush1.bf16.xpose.msra.mxu0 0
    %306 = vmatprep.subr.bf16.mxu0 0
    %307 = vmatpush1.bf16.xpose.msra.mxu0 0
    %308 = vmatprep.subr.bf16.mxu0 0
    %309 = vmatpush1.bf16.xpose.msra.mxu0 0
    %310 = vmatprep.subr.bf16.mxu0 0
    %311 = vmatpush1.bf16.xpose.msra.mxu0 0
    %312 = vmatprep.subr.bf16.mxu0 0
    %313 = vmatpush1.bf16.xpose.msra.mxu0 0
    %314 = vmatprep.subr.bf16.mxu0 0
    %315 = vmatpush1.bf16.xpose.msra.mxu0 0
    %316 = vmatprep.subr.bf16.mxu0 0
    %317 = vmatpush1.bf16.xpose.msra.mxu0 %v302
    %318 = vmatprep.subr.bf16.mxu0 0
    %319 = vmatpush1.bf16.xpose.msra.mxu0 %v299
    %320 = vmatprep.subr.bf16.mxu0 0
    %321 = vmatpush2.bf16.xpose.msra.mxu0 0
    %322 = vmatprep.subr.bf16.mxu0 0
    %323 = vmatpush2.bf16.xpose.msra.mxu0 0
    %324 = vmatprep.subr.bf16.mxu0 0
    %325 = vmatpush2.bf16.xpose.msra.mxu0 0
    %326 = vmatprep.subr.bf16.mxu0 0
    %327 = vmatpush2.bf16.xpose.msra.mxu0 0
    %328 = vmatprep.subr.bf16.mxu0 0
    %329 = vmatpush2.bf16.xpose.msra.mxu0 0
    %330 = vmatprep.subr.bf16.mxu0 0
    %331 = vmatpush2.bf16.xpose.msra.mxu0 0
    %332 = vmatprep.subr.bf16.mxu0 0
    %333 = vmatpush2.bf16.xpose.msra.mxu0 0
    %334 = vmatprep.subr.bf16.mxu0 0
    %335 = vmatpush2.bf16.xpose.msra.mxu0 0
    %336 = vmatprep.mubr.bf16.mxu0 0
    %337 = vmatmul.mubr.bf16.gmra.mxu0 %v296
    %v338 = vpop.f32.mrf.mxu0
    %v339 = vadd.f32 %v286, %v338
    %v340 = vpop.f32.mrf.mxu0
    %v341 = vpop.f32.mrf.mxu0
    %v342 = vadd.f32 %v287, %v341
    %v343 = vpop.f32.mrf.mxu0
    %344 = vdwg.mxu0
    %v345 = vsel %vm138, %v339, -inf
    %346 = vmax.xlane.f32.xlu0 %v345
    %v347 = vpop.xlane.xlu0 %346
    %v348 = vsel %vm138, %v342, -inf
    %349 = vmax.xlane.f32.xlu0 %v348
    %v350 = vpop.xlane.xlu0 %349
    %v351 = vsub.f32 %v339, %v347
    %v352 = vsub.f32 %v342, %v350
    %v353 = vmul.f32 %v351, 1.442695
    %v354 = vpow.pop %v353
    %v355 = vmul.f32 %v352, 1.442695
    %v356 = vpow.pop %v355
    %v357 = vsel %vm138, %v354, 0.0
    %358 = vadd.xlane.f32.xlu0 %v357
    %v359 = vpop.xlane.xlu0 %358
    %v360 = vsel %vm138, %v356, 0.0
    %361 = vadd.xlane.f32.xlu0 %v360
    %v362 = vpop.xlane.xlu0 %361
    %v363 = vpack.c.bf16 %v356, %v354
    %366 = vrot.lane.b32.xlu0 %v232, 64
    %v367 = vpop.permute.xlu0 %366
    %368 = vrot.lane.b32.xlu0 %v233, 64
    %v369 = vpop.permute.xlu0 %368
    %v373 = vsel %vm138, %v363, 0
    %375 = vmatprep.subr.bf16.mxu0 0
    %376 = vmatpush1.bf16.msra.mxu0 0
    %377 = vmatprep.subr.bf16.mxu0 0
    %378 = vmatpush1.bf16.msra.mxu0 0
    %379 = vmatprep.subr.bf16.mxu0 0
    %380 = vmatpush1.bf16.msra.mxu0 0
    %381 = vmatprep.subr.bf16.mxu0 0
    %382 = vmatpush1.bf16.msra.mxu0 0
    %383 = vmatprep.subr.bf16.mxu0 0
    %384 = vmatpush1.bf16.msra.mxu0 0
    %385 = vmatprep.subr.bf16.mxu0 0
    %386 = vmatpush1.bf16.msra.mxu0 0
    %387 = vmatprep.subr.bf16.mxu0 0
    %388 = vmatpush1.bf16.msra.mxu0 %v369
    %389 = vmatprep.subr.bf16.mxu0 0
    %390 = vmatpush1.bf16.msra.mxu0 %v367
    %391 = vmatprep.subr.bf16.mxu0 0
    %392 = vmatpush2.bf16.msra.mxu0 0
    %393 = vmatprep.subr.bf16.mxu0 0
    %394 = vmatpush2.bf16.msra.mxu0 0
    %395 = vmatprep.subr.bf16.mxu0 0
    %396 = vmatpush2.bf16.msra.mxu0 0
    %397 = vmatprep.subr.bf16.mxu0 0
    %398 = vmatpush2.bf16.msra.mxu0 0
    %399 = vmatprep.subr.bf16.mxu0 0
    %400 = vmatpush2.bf16.msra.mxu0 0
    %401 = vmatprep.subr.bf16.mxu0 0
    %402 = vmatpush2.bf16.msra.mxu0 0
    %403 = vmatprep.subr.bf16.mxu0 0
    %404 = vmatpush2.bf16.msra.mxu0 0
    %405 = vmatprep.subr.bf16.mxu0 0
    %406 = vmatpush2.bf16.msra.mxu0 0
    %407 = vmatprep.mubr.bf16.mxu0 0
    %408 = vmatmul.mubr.bf16.gmra.mxu0 %v373
    %v409 = vpop.f32.mrf.mxu0
    %v410 = vadd.f32 0.0, %v409
    %v411 = vpop.f32.mrf.mxu0
    %v412 = vpop.f32.mrf.mxu0
    %v413 = vadd.f32 0.0, %v412
    %v414 = vpop.f32.mrf.mxu0
    %415 = vdwg.mxu0
    %v416 = vrcp.pop %v359
    %v417 = vrcp.pop %v362
    %v418 = vmul.f32 %v410, %v416
    %v419 = vmul.f32 %v413, %v417
    %420 = vst.msk [vmem:[#allocation3] sm:$0xff] %vm294, %v418
    %421 = vst.msk [vmem:[#allocation3 + $0x8] sm:$0xff] %vm294, %v419
    %v422 = vld [vmem:[%s255] sm:$0xff]
    %v423 = vld [vmem:[%s255 + $0x8] sm:$0xff]
    %425 = vrot.lane.b32.xlu0 %v229, 120
    %v426 = vpop.permute.xlu0 %425
    %427 = vrot.lane.b32.xlu0 %v230, 88
    %v428 = vpop.permute.xlu0 %427
    %429 = vrot.lane.b32.xlu0 %v231, 88
    %v430 = vpop.permute.xlu0 %429
    %v432 = vsel %vm294, %v426, 0
    %v435 = vsel %vm294, %v428, 0
    %v438 = vsel %vm294, %v430, 0
    %440 = vmatprep.subr.bf16.mxu0 0
    %441 = vmatpush1.bf16.xpose.msra.mxu0 0
    %442 = vmatprep.subr.bf16.mxu0 0
    %443 = vmatpush1.bf16.xpose.msra.mxu0 0
    %444 = vmatprep.subr.bf16.mxu0 0
    %445 = vmatpush1.bf16.xpose.msra.mxu0 0
    %446 = vmatprep.subr.bf16.mxu0 0
    %447 = vmatpush1.bf16.xpose.msra.mxu0 0
    %448 = vmatprep.subr.bf16.mxu0 0
    %449 = vmatpush1.bf16.xpose.msra.mxu0 0
    %450 = vmatprep.subr.bf16.mxu0 0
    %451 = vmatpush1.bf16.xpose.msra.mxu0 0
    %452 = vmatprep.subr.bf16.mxu0 0
    %453 = vmatpush1.bf16.xpose.msra.mxu0 %v438
    %454 = vmatprep.subr.bf16.mxu0 0
    %455 = vmatpush1.bf16.xpose.msra.mxu0 %v435
    %456 = vmatprep.subr.bf16.mxu0 0
    %457 = vmatpush2.bf16.xpose.msra.mxu0 0
    %458 = vmatprep.subr.bf16.mxu0 0
    %459 = vmatpush2.bf16.xpose.msra.mxu0 0
    %460 = vmatprep.subr.bf16.mxu0 0
    %461 = vmatpush2.bf16.xpose.msra.mxu0 0
    %462 = vmatprep.subr.bf16.mxu0 0
    %463 = vmatpush2.bf16.xpose.msra.mxu0 0
    %464 = vmatprep.subr.bf16.mxu0 0
    %465 = vmatpush2.bf16.xpose.msra.mxu0 0
    %466 = vmatprep.subr.bf16.mxu0 0
    %467 = vmatpush2.bf16.xpose.msra.mxu0 0
    %468 = vmatprep.subr.bf16.mxu0 0
    %469 = vmatpush2.bf16.xpose.msra.mxu0 0
    %470 = vmatprep.subr.bf16.mxu0 0
    %471 = vmatpush2.bf16.xpose.msra.mxu0 0
    %472 = vmatprep.mubr.bf16.mxu0 0
    %473 = vmatmul.mubr.bf16.gmra.mxu0 %v432
    %v474 = vpop.f32.mrf.mxu0
    %v475 = vadd.f32 %v422, %v474
    %v476 = vpop.f32.mrf.mxu0
    %v477 = vpop.f32.mrf.mxu0
    %v478 = vadd.f32 %v423, %v477
    %v479 = vpop.f32.mrf.mxu0
    %480 = vdwg.mxu0
    %v481 = vsel %vm138, %v475, -inf
    %482 = vmax.xlane.f32.xlu0 %v481
    %v483 = vpop.xlane.xlu0 %482
    %v484 = vsel %vm138, %v478, -inf
    %485 = vmax.xlane.f32.xlu0 %v484
    %v486 = vpop.xlane.xlu0 %485
    %v487 = vsub.f32 %v475, %v483
    %v488 = vsub.f32 %v478, %v486
    %v489 = vmul.f32 %v487, 1.442695
    %v490 = vpow.pop %v489
    %v491 = vmul.f32 %v488, 1.442695
    %v492 = vpow.pop %v491
    %v493 = vsel %vm138, %v490, 0.0
    %494 = vadd.xlane.f32.xlu0 %v493
    %v495 = vpop.xlane.xlu0 %494
    %v496 = vsel %vm138, %v492, 0.0
    %497 = vadd.xlane.f32.xlu0 %v496
    %v498 = vpop.xlane.xlu0 %497
    %v499 = vpack.c.bf16 %v492, %v490
    %500 = vrot.lane.b32.xlu0 %v232, 56
    %v501 = vpop.permute.xlu0 %500
    %502 = vrot.lane.b32.xlu0 %v233, 56
    %v503 = vpop.permute.xlu0 %502
    %v507 = vsel %vm138, %v499, 0
    %509 = vmatprep.subr.bf16.mxu0 0
    %510 = vmatpush1.bf16.msra.mxu0 0
    %511 = vmatprep.subr.bf16.mxu0 0
    %512 = vmatpush1.bf16.msra.mxu0 0
    %513 = vmatprep.subr.bf16.mxu0 0
    %514 = vmatpush1.bf16.msra.mxu0 0
    %515 = vmatprep.subr.bf16.mxu0 0
    %516 = vmatpush1.bf16.msra.mxu0 0
    %517 = vmatprep.subr.bf16.mxu0 0
    %518 = vmatpush1.bf16.msra.mxu0 0
    %519 = vmatprep.subr.bf16.mxu0 0
    %520 = vmatpush1.bf16.msra.mxu0 0
    %521 = vmatprep.subr.bf16.mxu0 0
    %522 = vmatpush1.bf16.msra.mxu0 %v503
    %523 = vmatprep.subr.bf16.mxu0 0
    %524 = vmatpush1.bf16.msra.mxu0 %v501
    %525 = vmatprep.subr.bf16.mxu0 0
    %526 = vmatpush2.bf16.msra.mxu0 0
    %527 = vmatprep.subr.bf16.mxu0 0
    %528 = vmatpush2.bf16.msra.mxu0 0
    %529 = vmatprep.subr.bf16.mxu0 0
    %530 = vmatpush2.bf16.msra.mxu0 0
    %531 = vmatprep.subr.bf16.mxu0 0
    %532 = vmatpush2.bf16.msra.mxu0 0
    %533 = vmatprep.subr.bf16.mxu0 0
    %534 = vmatpush2.bf16.msra.mxu0 0
    %535 = vmatprep.subr.bf16.mxu0 0
    %536 = vmatpush2.bf16.msra.mxu0 0
    %537 = vmatprep.subr.bf16.mxu0 0
    %538 = vmatpush2.bf16.msra.mxu0 0
    %539 = vmatprep.subr.bf16.mxu0 0
    %540 = vmatpush2.bf16.msra.mxu0 0
    %541 = vmatprep.mubr.bf16.mxu0 0
    %542 = vmatmul.mubr.bf16.gmra.mxu0 %v507
    %v543 = vpop.f32.mrf.mxu0
    %v544 = vadd.f32 0.0, %v543
    %v545 = vpop.f32.mrf.mxu0
    %v546 = vpop.f32.mrf.mxu0
    %v547 = vadd.f32 0.0, %v546
    %v548 = vpop.f32.mrf.mxu0
    %549 = vdwg.mxu0
    %v550 = vrcp.pop %v495
    %v551 = vrcp.pop %v498
    %v552 = vmul.f32 %v544, %v550
    %v553 = vmul.f32 %v547, %v551
    %556 = vrot.lane.b32.xlu0 %v552, 8
    %v557 = vpop.permute.xlu0 %556
    %558 = vrot.lane.b32.xlu0 %v553, 8
    %v559 = vpop.permute.xlu0 %558
    %vm562 = vcmask 130112
    %563 = vst.msk [vmem:[#allocation3] sm:$0xff] %vm562, %v557
    %564 = vst.msk [vmem:[#allocation3 + $0x8] sm:$0xff] %vm562, %v559
    %v565 = vld [vmem:[%s266] sm:$0xff]
    %v566 = vld [vmem:[%s266 + $0x8] sm:$0xff]
    %567 = vrot.lane.b32.xlu0 %v229, 112
    %v568 = vpop.permute.xlu0 %567
    %569 = vrot.lane.b32.xlu0 %v230, 80
    %v570 = vpop.permute.xlu0 %569
    %571 = vrot.lane.b32.xlu0 %v231, 80
    %v572 = vpop.permute.xlu0 %571
    %v574 = vsel %vm294, %v568, 0
    %v577 = vsel %vm294, %v570, 0
    %v580 = vsel %vm294, %v572, 0
    %582 = vmatprep.subr.bf16.mxu0 0
    %583 = vmatpush1.bf16.xpose.msra.mxu0 0
    %584 = vmatprep.subr.bf16.mxu0 0
    %585 = vmatpush1.bf16.xpose.msra.mxu0 0
    %586 = vmatprep.subr.bf16.mxu0 0
    %587 = vmatpush1.bf16.xpose.msra.mxu0 0
    %588 = vmatprep.subr.bf16.mxu0 0
    %589 = vmatpush1.bf16.xpose.msra.mxu0 0
    %590 = vmatprep.subr.bf16.mxu0 0
    %591 = vmatpush1.bf16.xpose.msra.mxu0 0
    %592 = vmatprep.subr.bf16.mxu0 0
    %593 = vmatpush1.bf16.xpose.msra.mxu0 0
    %594 = vmatprep.subr.bf16.mxu0 0
    %595 = vmatpush1.bf16.xpose.msra.mxu0 %v580
    %596 = vmatprep.subr.bf16.mxu0 0
    %597 = vmatpush1.bf16.xpose.msra.mxu0 %v577
    %598 = vmatprep.subr.bf16.mxu0 0
    %599 = vmatpush2.bf16.xpose.msra.mxu0 0
    %600 = vmatprep.subr.bf16.mxu0 0
    %601 = vmatpush2.bf16.xpose.msra.mxu0 0
    %602 = vmatprep.subr.bf16.mxu0 0
    %603 = vmatpush2.bf16.xpose.msra.mxu0 0
    %604 = vmatprep.subr.bf16.mxu0 0
    %605 = vmatpush2.bf16.xpose.msra.mxu0 0
    %606 = vmatprep.subr.bf16.mxu0 0
    %607 = vmatpush2.bf16.xpose.msra.mxu0 0
    %608 = vmatprep.subr.bf16.mxu0 0
    %609 = vmatpush2.bf16.xpose.msra.mxu0 0
    %610 = vmatprep.subr.bf16.mxu0 0
    %611 = vmatpush2.bf16.xpose.msra.mxu0 0
    %612 = vmatprep.subr.bf16.mxu0 0
    %613 = vmatpush2.bf16.xpose.msra.mxu0 0
    %614 = vmatprep.mubr.bf16.mxu0 0
    %615 = vmatmul.mubr.bf16.gmra.mxu0 %v574
    %v616 = vpop.f32.mrf.mxu0
    %v617 = vadd.f32 %v565, %v616
    %v618 = vpop.f32.mrf.mxu0
    %v619 = vpop.f32.mrf.mxu0
    %v620 = vadd.f32 %v566, %v619
    %v621 = vpop.f32.mrf.mxu0
    %622 = vdwg.mxu0
    %v623 = vsel %vm138, %v617, -inf
    %624 = vmax.xlane.f32.xlu0 %v623
    %v625 = vpop.xlane.xlu0 %624
    %v626 = vsel %vm138, %v620, -inf
    %627 = vmax.xlane.f32.xlu0 %v626
    %v628 = vpop.xlane.xlu0 %627
    %v629 = vsub.f32 %v617, %v625
    %v630 = vsub.f32 %v620, %v628
    %v631 = vmul.f32 %v629, 1.442695
    %v632 = vpow.pop %v631
    %v633 = vmul.f32 %v630, 1.442695
    %v634 = vpow.pop %v633
    %v635 = vsel %vm138, %v632, 0.0
    %636 = vadd.xlane.f32.xlu0 %v635
    %v637 = vpop.xlane.xlu0 %636
    %v638 = vsel %vm138, %v634, 0.0
    %639 = vadd.xlane.f32.xlu0 %v638
    %v640 = vpop.xlane.xlu0 %639
    %v641 = vpack.c.bf16 %v634, %v632
    %642 = vrot.lane.b32.xlu0 %v232, 48
    %v643 = vpop.permute.xlu0 %642
    %644 = vrot.lane.b32.xlu0 %v233, 48
    %v645 = vpop.permute.xlu0 %644
    %v649 = vsel %vm138, %v641, 0
    %651 = vmatprep.subr.bf16.mxu0 0
    %652 = vmatpush1.bf16.msra.mxu0 0
    %653 = vmatprep.subr.bf16.mxu0 0
    %654 = vmatpush1.bf16.msra.mxu0 0
    %655 = vmatprep.subr.bf16.mxu0 0
    %656 = vmatpush1.bf16.msra.mxu0 0
    %657 = vmatprep.subr.bf16.mxu0 0
    %658 = vmatpush1.bf16.msra.mxu0 0
    %659 = vmatprep.subr.bf16.mxu0 0
    %660 = vmatpush1.bf16.msra.mxu0 0
    %661 = vmatprep.subr.bf16.mxu0 0
    %662 = vmatpush1.bf16.msra.mxu0 0
    %663 = vmatprep.subr.bf16.mxu0 0
    %664 = vmatpush1.bf16.msra.mxu0 %v645
    %665 = vmatprep.subr.bf16.mxu0 0
    %666 = vmatpush1.bf16.msra.mxu0 %v643
    %667 = vmatprep.subr.bf16.mxu0 0
    %668 = vmatpush2.bf16.msra.mxu0 0
    %669 = vmatprep.subr.bf16.mxu0 0
    %670 = vmatpush2.bf16.msra.mxu0 0
    %671 = vmatprep.subr.bf16.mxu0 0
    %672 = vmatpush2.bf16.msra.mxu0 0
    %673 = vmatprep.subr.bf16.mxu0 0
    %674 = vmatpush2.bf16.msra.mxu0 0
    %675 = vmatprep.subr.bf16.mxu0 0
    %676 = vmatpush2.bf16.msra.mxu0 0
    %677 = vmatprep.subr.bf16.mxu0 0
    %678 = vmatpush2.bf16.msra.mxu0 0
    %679 = vmatprep.subr.bf16.mxu0 0
    %680 = vmatpush2.bf16.msra.mxu0 0
    %681 = vmatprep.subr.bf16.mxu0 0
    %682 = vmatpush2.bf16.msra.mxu0 0
    %683 = vmatprep.mubr.bf16.mxu0 0
    %684 = vmatmul.mubr.bf16.gmra.mxu0 %v649
    %v685 = vpop.f32.mrf.mxu0
    %v686 = vadd.f32 0.0, %v685
    %v687 = vpop.f32.mrf.mxu0
    %v688 = vpop.f32.mrf.mxu0
    %v689 = vadd.f32 0.0, %v688
    %v690 = vpop.f32.mrf.mxu0
    %691 = vdwg.mxu0
    %v692 = vrcp.pop %v637
    %v693 = vrcp.pop %v640
    %v694 = vmul.f32 %v686, %v692
    %v695 = vmul.f32 %v689, %v693
    %698 = vrot.lane.b32.xlu0 %v694, 16
    %v699 = vpop.permute.xlu0 %698
    %700 = vrot.lane.b32.xlu0 %v695, 16
    %v701 = vpop.permute.xlu0 %700
    %vm704 = vcmask 195712
    %705 = vst.msk [vmem:[#allocation3] sm:$0xff] %vm704, %v699
    %706 = vst.msk [vmem:[#allocation3 + $0x8] sm:$0xff] %vm704, %v701
    %v707 = vld [vmem:[%s277] sm:$0xff]
    %v708 = vld [vmem:[%s277 + $0x8] sm:$0xff]
    %709 = vrot.lane.b32.xlu0 %v229, 104
    %v710 = vpop.permute.xlu0 %709
    %711 = vrot.lane.b32.xlu0 %v230, 72
    %v712 = vpop.permute.xlu0 %711
    %713 = vrot.lane.b32.xlu0 %v231, 72
    %v714 = vpop.permute.xlu0 %713
    %v716 = vsel %vm294, %v710, 0
    %v719 = vsel %vm294, %v712, 0
    %v722 = vsel %vm294, %v714, 0
    %724 = vmatprep.subr.bf16.mxu0 0
    %725 = vmatpush1.bf16.xpose.msra.mxu0 0
    %726 = vmatprep.subr.bf16.mxu0 0
    %727 = vmatpush1.bf16.xpose.msra.mxu0 0
    %728 = vmatprep.subr.bf16.mxu0 0
    %729 = vmatpush1.bf16.xpose.msra.mxu0 0
    %730 = vmatprep.subr.bf16.mxu0 0
    %731 = vmatpush1.bf16.xpose.msra.mxu0 0
    %732 = vmatprep.subr.bf16.mxu0 0
    %733 = vmatpush1.bf16.xpose.msra.mxu0 0
    %734 = vmatprep.subr.bf16.mxu0 0
    %735 = vmatpush1.bf16.xpose.msra.mxu0 0
    %736 = vmatprep.subr.bf16.mxu0 0
    %737 = vmatpush1.bf16.xpose.msra.mxu0 %v722
    %738 = vmatprep.subr.bf16.mxu0 0
    %739 = vmatpush1.bf16.xpose.msra.mxu0 %v719
    %740 = vmatprep.subr.bf16.mxu0 0
    %741 = vmatpush2.bf16.xpose.msra.mxu0 0
    %742 = vmatprep.subr.bf16.mxu0 0
    %743 = vmatpush2.bf16.xpose.msra.mxu0 0
    %744 = vmatprep.subr.bf16.mxu0 0
    %745 = vmatpush2.bf16.xpose.msra.mxu0 0
    %746 = vmatprep.subr.bf16.mxu0 0
    %747 = vmatpush2.bf16.xpose.msra.mxu0 0
    %748 = vmatprep.subr.bf16.mxu0 0
    %749 = vmatpush2.bf16.xpose.msra.mxu0 0
    %750 = vmatprep.subr.bf16.mxu0 0
    %751 = vmatpush2.bf16.xpose.msra.mxu0 0
    %752 = vmatprep.subr.bf16.mxu0 0
    %753 = vmatpush2.bf16.xpose.msra.mxu0 0
    %754 = vmatprep.subr.bf16.mxu0 0
    %755 = vmatpush2.bf16.xpose.msra.mxu0 0
    %756 = vmatprep.mubr.bf16.mxu0 0
    %757 = vmatmul.mubr.bf16.gmra.mxu0 %v716
    %v758 = vpop.f32.mrf.mxu0
    %v759 = vadd.f32 %v707, %v758
    %v760 = vpop.f32.mrf.mxu0
    %v761 = vpop.f32.mrf.mxu0
    %v762 = vadd.f32 %v708, %v761
    %v763 = vpop.f32.mrf.mxu0
    %764 = vdwg.mxu0
    %v765 = vsel %vm138, %v759, -inf
    %766 = vmax.xlane.f32.xlu0 %v765
    %v767 = vpop.xlane.xlu0 %766
    %v768 = vsel %vm138, %v762, -inf
    %769 = vmax.xlane.f32.xlu0 %v768
    %v770 = vpop.xlane.xlu0 %769
    %v771 = vsub.f32 %v759, %v767
    %v772 = vsub.f32 %v762, %v770
    %v773 = vmul.f32 %v771, 1.442695
    %v774 = vpow.pop %v773
    %v775 = vmul.f32 %v772, 1.442695
    %v776 = vpow.pop %v775
    %v777 = vsel %vm138, %v774, 0.0
    %778 = vadd.xlane.f32.xlu0 %v777
    %v779 = vpop.xlane.xlu0 %778
    %v780 = vsel %vm138, %v776, 0.0
    %781 = vadd.xlane.f32.xlu0 %v780
    %v782 = vpop.xlane.xlu0 %781
    %v783 = vpack.c.bf16 %v776, %v774
    %784 = vrot.lane.b32.xlu0 %v232, 40
    %v785 = vpop.permute.xlu0 %784
    %786 = vrot.lane.b32.xlu0 %v233, 40
    %v787 = vpop.permute.xlu0 %786
    %v791 = vsel %vm138, %v783, 0
    %793 = vmatprep.subr.bf16.mxu0 0
    %794 = vmatpush1.bf16.msra.mxu0 0
    %795 = vmatprep.subr.bf16.mxu0 0
    %796 = vmatpush1.bf16.msra.mxu0 0
    %797 = vmatprep.subr.bf16.mxu0 0
    %798 = vmatpush1.bf16.msra.mxu0 0
    %799 = vmatprep.subr.bf16.mxu0 0
    %800 = vmatpush1.bf16.msra.mxu0 0
    %801 = vmatprep.subr.bf16.mxu0 0
    %802 = vmatpush1.bf16.msra.mxu0 0
    %803 = vmatprep.subr.bf16.mxu0 0
    %804 = vmatpush1.bf16.msra.mxu0 0
    %805 = vmatprep.subr.bf16.mxu0 0
    %806 = vmatpush1.bf16.msra.mxu0 %v787
    %807 = vmatprep.subr.bf16.mxu0 0
    %808 = vmatpush1.bf16.msra.mxu0 %v785
    %809 = vmatprep.subr.bf16.mxu0 0
    %810 = vmatpush2.bf16.msra.mxu0 0
    %811 = vmatprep.subr.bf16.mxu0 0
    %812 = vmatpush2.bf16.msra.mxu0 0
    %813 = vmatprep.subr.bf16.mxu0 0
    %814 = vmatpush2.bf16.msra.mxu0 0
    %815 = vmatprep.subr.bf16.mxu0 0
    %816 = vmatpush2.bf16.msra.mxu0 0
    %817 = vmatprep.subr.bf16.mxu0 0
    %818 = vmatpush2.bf16.msra.mxu0 0
    %819 = vmatprep.subr.bf16.mxu0 0
    %820 = vmatpush2.bf16.msra.mxu0 0
    %821 = vmatprep.subr.bf16.mxu0 0
    %822 = vmatpush2.bf16.msra.mxu0 0
    %823 = vmatprep.subr.bf16.mxu0 0
    %824 = vmatpush2.bf16.msra.mxu0 0
    %825 = vmatprep.mubr.bf16.mxu0 0
    %826 = vmatmul.mubr.bf16.gmra.mxu0 %v791
    %v827 = vpop.f32.mrf.mxu0
    %v828 = vadd.f32 0.0, %v827
    %v829 = vpop.f32.mrf.mxu0
    %v830 = vpop.f32.mrf.mxu0
    %v831 = vadd.f32 0.0, %v830
    %v832 = vpop.f32.mrf.mxu0
    %833 = vdwg.mxu0
    %v834 = vrcp.pop %v779
    %v835 = vrcp.pop %v782
    %v836 = vmul.f32 %v828, %v834
    %v837 = vmul.f32 %v831, %v835
    %840 = vrot.lane.b32.xlu0 %v836, 24
    %v841 = vpop.permute.xlu0 %840
    %842 = vrot.lane.b32.xlu0 %v837, 24
    %v843 = vpop.permute.xlu0 %842
    %vm846 = vcmask 261312
    %847 = vst.msk [vmem:[#allocation3] sm:$0xff] %vm846, %v841
    %848 = vst.msk [vmem:[#allocation3 + $0x8] sm:$0xff] %vm846, %v843
    %v849 = vld [vmem:[#allocation3] sm:$0xff]
    %v850 = vld [vmem:[#allocation3 + $0x8] sm:$0xff]
    %v851 = vpack.c.bf16 %v850, %v849
    %v852 = vld [vmem:[#allocation13] sm:$0xf]
    %v853 = vld [vmem:[#allocation13 + $0x4] sm:$0xf]
    %v854 = vld [vmem:[#allocation13 + $0x8] sm:$0xf]
    %v855 = vld [vmem:[#allocation13 + $0xc] sm:$0xf]
    %v860 = vunpack.c.l.b16 %v852
    %v861 = vunpack.c.l.b16 %v853
    %v862 = vunpack.c.l.b16 %v854
    %v863 = vunpack.c.l.b16 %v855
    %v864 = vpack.c.b16 %v861, %v860
    %v865 = vpack.c.b16 %v863, %v862
    %v869 = vsel %vm138, %v851, 0
    %871 = vmatprep.subr.bf16.mxu0 0
    %872 = vmatpush1.bf16.msra.mxu0 0
    %873 = vmatprep.subr.bf16.mxu0 0
    %874 = vmatpush1.bf16.msra.mxu0 0
    %875 = vmatprep.subr.bf16.mxu0 0
    %876 = vmatpush1.bf16.msra.mxu0 0
    %877 = vmatprep.subr.bf16.mxu0 0
    %878 = vmatpush1.bf16.msra.mxu0 0
    %879 = vmatprep.subr.bf16.mxu0 0
    %880 = vmatpush1.bf16.msra.mxu0 0
    %881 = vmatprep.subr.bf16.mxu0 0
    %882 = vmatpush1.bf16.msra.mxu0 0
    %883 = vmatprep.subr.bf16.mxu0 0
    %884 = vmatpush1.bf16.msra.mxu0 %v865
    %885 = vmatprep.subr.bf16.mxu0 0
    %886 = vmatpush1.bf16.msra.mxu0 %v864
    %887 = vmatprep.subr.bf16.mxu0 0
    %888 = vmatpush2.bf16.msra.mxu0 0
    %889 = vmatprep.subr.bf16.mxu0 0
    %890 = vmatpush2.bf16.msra.mxu0 0
    %891 = vmatprep.subr.bf16.mxu0 0
    %892 = vmatpush2.bf16.msra.mxu0 0
    %893 = vmatprep.subr.bf16.mxu0 0
    %894 = vmatpush2.bf16.msra.mxu0 0
    %895 = vmatprep.subr.bf16.mxu0 0
    %896 = vmatpush2.bf16.msra.mxu0 0
    %897 = vmatprep.subr.bf16.mxu0 0
    %898 = vmatpush2.bf16.msra.mxu0 0
    %899 = vmatprep.subr.bf16.mxu0 0
    %900 = vmatpush2.bf16.msra.mxu0 0
    %901 = vmatprep.subr.bf16.mxu0 0
    %902 = vmatpush2.bf16.msra.mxu0 0
    %903 = vmatprep.mubr.bf16.mxu0 0
    %904 = vmatmul.mubr.bf16.gmra.mxu0 %v869
    %v905 = vpop.f32.mrf.mxu0
    %v906 = vadd.f32 0.0, %v905
    %v907 = vpop.f32.mrf.mxu0
    %v908 = vpop.f32.mrf.mxu0
    %v909 = vadd.f32 0.0, %v908
    %v910 = vpop.f32.mrf.mxu0
    %911 = vdwg.mxu0
    %912 = vst.msk [vmem:[#allocation15] sm:$0xff] %vm138, %v906
    %913 = vst.msk [vmem:[#allocation15 + $0x8] sm:$0xff] %vm138, %v909
    // Predicated region
    $region50: #{cross_attention.1} parent=1 // pred_check
      _
    $region51: #{cross_attention.1} parent=1 // pred_check_branch
      %915 = sbr.rel (0) target = $region53
    $region52: #{cross_attention.1} parent=1 // pred_region
      %s917 = ssub.s32 256, 256
      %918 = vsyncadd [#allocation6], %s917
      %s919 = sshll.u32 [#allocation15], 4
      %s920 = int_to_ptr.vmem [resolvable:$true] %s919
      %925 = dma.vmem_to_hbm [thread:$0]  %s920, 256, %s6, [#allocation6], 128, 128, 8
    $region53: #{cross_attention.1} parent=1 // pred_fallthru
      _
    // Predicated region
    $region54: #{cross_attention.1} parent=1 // pred_check
      _
    $region55: #{cross_attention.1} parent=1 // pred_check_branch
      %927 = sbr.rel (0) target = $region57
    $region56: #{cross_attention.1} parent=1 // pred_region
      %928 = dma.done [#allocation6], 256
    $region57: #{cross_attention.1} parent=1 // pred_fallthru
      _
    %929 = vsyncpa [#allocation5], 1
    %930 = vsyncpa [#allocation8], 1
    %931 = vsyncpa [#allocation11], 1
    %932 = vsyncpa [#allocation14], 1
    %933 = vsyncpa [#allocation6], 1

</llo_original>
